<compile_context>
chip_gen: v7x
topology: tpu7x:2x2x1
jax: 0.10.0
libtpu: 0.0.40
codegen_flags: <defaults>
</compile_context>

<pallas_src>
import math
import functools

import jax
import jax.numpy as jnp
from jax.experimental import pallas as pl
from jax.experimental.pallas import tpu as pltpu


# ----------------------------------------------------------------------------
# Linear kernel: y = x @ W + b, tiled over rows, weight resident across tiles.
# ----------------------------------------------------------------------------
def _linear_kernel(x_ref, w_ref, b_ref, o_ref):
    o_ref[...] = (
        jnp.dot(x_ref[...], w_ref[...], preferred_element_type=jnp.float32)
        + b_ref[...]
    ).astype(o_ref.dtype)


def pallas_linear(x2d, w, b, *, tm=512):
    """x2d: (M, Din) @ w: (Din, Dout) + b: (Dout,) -> (M, Dout)."""
    M, Din = x2d.shape
    Dout = w.shape[1]
    tm = min(tm, M)
    return pl.pallas_call(
        _linear_kernel,
        grid=(pl.cdiv(M, tm),),
        in_specs=[
            pl.BlockSpec((tm, Din), lambda i: (i, 0)),
            pl.BlockSpec((Din, Dout), lambda i: (0, 0)),   # weight resident
            pl.BlockSpec((1, Dout), lambda i: (0, 0)),
        ],
        out_specs=pl.BlockSpec((tm, Dout), lambda i: (i, 0)),
        out_shape=jax.ShapeDtypeStruct((M, Dout), jnp.float32),
        compiler_params=pltpu.CompilerParams(
            dimension_semantics=("parallel",)),
    )(x2d, w, b.reshape(1, Dout))


# ----------------------------------------------------------------------------
# Attention kernel.
#   One (batch, query-tile) per grid step; heads are statically unrolled inside
#   the kernel (packed layout -> static lane slices per head).
#   Outputs: full attn-map block, the OUTPUT-PROJECTED context (ff fused in),
#   and the block-averaged (AvgPool2d) attention for the MSE loss.
# ----------------------------------------------------------------------------
def _attention_kernel(q_ref, k_ref, v_ref, bias_ref, pk_ref, pq_ref,
                      wo_ref, bo_ref,
                      attn_ref, out_ref, pooled_ref, *, num_head, head_dim):
    # q_ref:    (tq, H*Dh)   Q tile, already scaled by 1/sqrt(Dh)
    # k_ref:    (S,  H*Dh)
    # v_ref:    (S,  H*Dh)
    # bias_ref: (1, S)       additive mask bias (-1e6 * (1 - mask))
    # pk_ref:   (S, nb)      key-block pooling matrix   (entries 1/block_size)
    # pq_ref:   (nqb, tq)    query-block pooling matrix (entries 1/block_size)
    # wo_ref:   (H*Dh, D)    output projection weight (resident)
    # bo_ref:   (1, D)       output projection bias
    # attn_ref:   (H, tq, S)
    # out_ref:    (tq, D)        ff(combine_heads(ctx)) for this query tile
    # pooled_ref: (H, nqb, nb)   avg-pooled attention for this query tile
    bias = bias_ref[...]
    pk = pk_ref[...]
    pq = pq_ref[...]

    ctx_parts = []
    for h in range(num_head):                     # static unroll over heads
        lo = h * head_dim
        hi = lo + head_dim
        q = q_ref[:, lo:hi]                       # (tq, Dh)
        k = k_ref[:, lo:hi]                       # (S, Dh)
        v = v_ref[:, lo:hi]                       # (S, Dh)

        # QK^T without transposing K (contract last dims of both operands).
        s = jax.lax.dot_general(q, k, (((1,), (1,)), ((), ())),
                                preferred_element_type=jnp.float32)  # (tq, S)
        s = s + bias                              # broadcast over query rows

        # numerically-stable softmax along keys
        m = jnp.max(s, axis=-1, keepdims=True)
        e = jnp.exp(s - m)
        denom = jnp.sum(e, axis=-1, keepdims=True)
        p = e * pl.reciprocal(denom, approx=True)

        attn_ref[h] = p
        ctx_parts.append(jnp.dot(p, v, preferred_element_type=jnp.float32))

        # fused AvgPool2d(block_size): two small matmuls (scales baked in)
        col = jnp.dot(p, pk, preferred_element_type=jnp.float32)       # (tq, nb)
        pooled_ref[h] = jnp.dot(pq, col, preferred_element_type=jnp.float32)

    # combine heads (lane concat) and fused output projection -> (tq, D)
    ctx = jnp.concatenate(ctx_parts, axis=-1)
    out_ref[...] = (
        jnp.dot(ctx, wo_ref[...], preferred_element_type=jnp.float32)
        + bo_ref[...]
    ).astype(out_ref.dtype)


def _choose_tq(S, block_size, max_tq=256):
    """Query tile size: full S for short sequences, else a 128-multiple that
    divides S and is a multiple of block_size (keeps VMEM bounded on v7x)."""
    if S <= max_tq:
        return S
    tq = max_tq
    while tq >= 128:
        if S % tq == 0 and tq % block_size == 0:
            return tq
        tq -= 128
    return S


def pallas_softmax_attention(q, k, v, bias, wo, bo, *, num_head, head_dim,
                             block_size, tq):
    """q, k, v: (B, S, H*Dh) f32 (q pre-scaled), bias: (B, 1, S) f32,
       wo: (H*Dh, D), bo: (D,).

    Returns:
      attn:   (B, H, S, S)
      out:    (B, S, D)        ff(combine_heads(context))
      pooled: (B, H, nb, nb)   AvgPool2d(block_size) of attn (for the MSE loss)
    """
    B, S, inner = q.shape
    D = wo.shape[1]
    assert inner == num_head * head_dim
    assert S % tq == 0 and tq % block_size == 0
    nb = S // block_size
    nqb = tq // block_size
    n_qt = S // tq

    # Pooling matrices (the 1/block_size factors give an exact average).
    pk = (jnp.arange(S)[:, None] // block_size
          == jnp.arange(nb)[None, :]).astype(jnp.float32) / block_size
    pq = (jnp.arange(nqb)[:, None]
          == jnp.arange(tq)[None, :] // block_size).astype(jnp.float32) / block_size

    kernel = functools.partial(_attention_kernel,
                               num_head=num_head, head_dim=head_dim)

    attn, out, pooled = pl.pallas_call(
        kernel,
        grid=(B, n_qt),
        in_specs=[
            pl.BlockSpec((None, tq, inner), lambda b, qi: (b, qi, 0)),   # Q tile
            pl.BlockSpec((None, S, inner), lambda b, qi: (b, 0, 0)),     # K (resident over qi)
            pl.BlockSpec((None, S, inner), lambda b, qi: (b, 0, 0)),     # V (resident over qi)
            pl.BlockSpec((None, 1, S), lambda b, qi: (b, 0, 0)),         # mask bias
            pl.BlockSpec((S, nb), lambda b, qi: (0, 0)),                 # key pooling
            pl.BlockSpec((nqb, tq), lambda b, qi: (0, 0)),               # query pooling
            pl.BlockSpec((inner, D), lambda b, qi: (0, 0)),              # Wo (resident)
            pl.BlockSpec((1, D), lambda b, qi: (0, 0)),                  # bo
        ],
        out_specs=(
            pl.BlockSpec((None, num_head, tq, S), lambda b, qi: (b, 0, qi, 0)),
            pl.BlockSpec((None, tq, D), lambda b, qi: (b, qi, 0)),
            pl.BlockSpec((None, None, num_head, nqb, nb),
                         lambda b, qi: (b, qi, 0, 0, 0)),
        ),
        out_shape=(
            jax.ShapeDtypeStruct((B, num_head, S, S), jnp.float32),
            jax.ShapeDtypeStruct((B, S, D), jnp.float32),
            jax.ShapeDtypeStruct((B, n_qt, num_head, nqb, nb), jnp.float32),
        ),
        compiler_params=pltpu.CompilerParams(
            dimension_semantics=("parallel", "parallel")),
    )(q, k, v, bias, pk, pq, wo, bo.reshape(1, D))

    # (B, n_qt, H, nqb, nb) -> (B, H, n_qt*nqb=nb, nb); tiny tensor, cheap.
    pooled = pooled.transpose(0, 2, 1, 3, 4).reshape(B, num_head, nb, nb)
    return attn, out, pooled


# ----------------------------------------------------------------------------
# Module wrapper (plain JAX glue).
# ----------------------------------------------------------------------------
class AttentionPallas:
    def __init__(self, config, key):
        self.dim = config["transformer_dim"]
        self.head_dim = config["head_dim"]
        self.num_head = config["num_head"]
        self.seq_len = config["max_seq_len"]
        self.block_size = config["block_size"]
        self.num_blocks = self.seq_len // self.block_size

        inner = self.num_head * self.head_dim
        keys = jax.random.split(key, 9)

        def lin_init(kw, kb, fan_in, fan_out):
            bound = 1.0 / math.sqrt(fan_in)
            w = jax.random.uniform(kw, (fan_in, fan_out), jnp.float32, -bound, bound)
            b = jax.random.uniform(kb, (fan_out,), jnp.float32, -bound, bound)
            return w, b

        self.Wq, self.bq = lin_init(keys[0], keys[1], self.dim, inner)
        self.Wk, self.bk = lin_init(keys[2], keys[3], self.dim, inner)
        self.Wv, self.bv = lin_init(keys[4], keys[5], self.dim, inner)
        self.Wo, self.bo = lin_init(keys[6], keys[7], inner, self.dim)
        # pattern ~ torch.rand(num_blocks, head_dim)
        self.pattern = jax.random.uniform(
            keys[8], (self.num_blocks, self.head_dim), jnp.float32, 0.0, 1.0)

        # Fused QKV projection weight; 1/sqrt(head_dim) scale folded into Wq/bq.
        scale = 1.0 / math.sqrt(self.head_dim)
        self.Wqkv = jnp.concatenate([self.Wq * scale, self.Wk, self.Wv], axis=1)
        self.bqkv = jnp.concatenate([self.bq * scale, self.bk, self.bv], axis=0)

    def __call__(self, X, mask):
        B, S, D = X.shape
        inner = self.num_head * self.head_dim

        # Single fused QKV projection (one HBM read of X, one tiled matmul).
        qkv = pallas_linear(X.reshape(B * S, D), self.Wqkv, self.bqkv)
        qkv = qkv.reshape(B, S, 3 * inner)
        q = qkv[..., :inner]              # already scaled by 1/sqrt(Dh)
        k = qkv[..., inner:2 * inner]
        v = qkv[..., 2 * inner:]

        # Additive mask bias, computed once (same constant as the reference).
        bias = (-1000000.0 * (1.0 - mask.astype(jnp.float32))).reshape(B, 1, S)

        # TODO(synk): attention dropout omitted (deterministic / eval semantics).
        tq = _choose_tq(S, self.block_size)
        attn, out, pooled = pallas_softmax_attention(
            q, k, v, bias, self.Wo, self.bo,
            num_head=self.num_head, head_dim=self.head_dim,
            block_size=self.block_size, tq=tq)

        # MSE loss between (fused) pooled attention and the pattern Gram matrix.
        attn_pattern = jnp.dot(self.pattern, self.pattern.T)
        attn_loss = jnp.mean((pooled - attn_pattern[None, None]) ** 2)

        return out, attn_loss, attn


# ----------------------------------------------------------------------------
# Pure-JAX reference (mirrors the PyTorch module) for a correctness check.
# ----------------------------------------------------------------------------
def _reference_forward(m, X, mask):
    B, S, D = X.shape
    H, Dh = m.num_head, m.head_dim
    inner = H * Dh

    def lin(x, w, b):
        return jnp.dot(x, w) + b

    def split(t):
        return jnp.transpose(t.reshape(B, S, H, Dh), (0, 2, 1, 3))

    Q = split(lin(X, m.Wq, m.bq))
    K = split(lin(X, m.Wk, m.bk))
    V = split(lin(X, m.Wv, m.bv))
    dot = jnp.einsum("bhqd,bhkd->bhqk", Q, K) / math.sqrt(Dh)
    dot = dot - 1000000.0 * (1.0 - mask[:, None, None, :])
    attn = jax.nn.softmax(dot, axis=-1)
    ctx = jnp.einsum("bhqk,bhkd->bhqd", attn, V)
    ctx = jnp.transpose(ctx, (0, 2, 1, 3)).reshape(B, S, inner)
    out = lin(ctx, m.Wo, m.bo)
    nb, bs = m.num_blocks, m.block_size
    pooled = attn.reshape(B, H, nb, bs, nb, bs).mean(axis=(3, 5))
    pat = jnp.dot(m.pattern, m.pattern.T)
    loss = jnp.mean((pooled - pat[None, None]) ** 2)
    return out, loss, attn


# ----------------------------------------------------------------------------
# Demo
# ----------------------------------------------------------------------------
if __name__ == "__main__":
    config = {
        "transformer_dim": 32,
        "head_dim": 8,
        "num_head": 2,
        "max_seq_len": 16,
        "block_size": 4,
        "attention_dropout": 0.0,
    }
    B, S, D = 2, config["max_seq_len"], config["transformer_dim"]

    key = jax.random.PRNGKey(0)
    k_param, k_x, _ = jax.random.split(key, 3)

    module = AttentionPallas(config, k_param)

    X = jax.random.normal(k_x, (B, S, D), jnp.float32)
    # mask: keep first 12 positions of batch 0, all of batch 1
    mask = jnp.ones((B, S), jnp.float32).at[0, 12:].set(0.0)

    out, attn_loss, attn = module(X, mask)
    jax.block_until_ready((out, attn_loss, attn))

    assert out.shape == (B, S, D)
    assert attn.shape == (B, config["num_head"], S, S)
    assert attn_loss.shape == ()

    out_r, loss_r, attn_r = _reference_forward(module, X, mask)
    assert jnp.allclose(attn, attn_r, atol=1e-2, rtol=1e-2)
    assert jnp.allclose(out, out_r, atol=1e-2, rtol=1e-2)
    assert jnp.allclose(attn_loss, loss_r, atol=1e-2, rtol=1e-2)

    print("KERNEL_OK")
</pallas_src>

<mosaic_0001>
module attributes {stable_mosaic.version = 11 : i64} {
  func.func @_linear_kernel(%arg0: i32, %arg1: memref<32x32xf32, #tpu.memory_space<vmem>>, %arg2: memref<32x48xf32, #tpu.memory_space<vmem>>, %arg3: memref<1x48xf32, #tpu.memory_space<vmem>>, %arg4: memref<32x48xf32, #tpu.memory_space<vmem>>) attributes {dimension_semantics = [#tpu.dimension_semantics<parallel>], iteration_bounds = array<i64: 1>, scalar_prefetch = 0 : i64, scratch_operands = 0 : i64, tpu.core_type = #tpu.core_type<tc>, window_params = [{transform_indices = @transform_0, window_bounds = array<i64: 32, 32>}, {pipeline_mode = #tpu.pipeline_mode<synchronous>, transform_indices = @transform_1, window_bounds = array<i64: 32, 48>}, {pipeline_mode = #tpu.pipeline_mode<synchronous>, transform_indices = @transform_2, window_bounds = array<i64: 1, 48>}, {transform_indices = @transform_3, window_bounds = array<i64: 32, 48>}]} {
    %c0 = arith.constant 0 : index
    %c0_0 = arith.constant 0 : index
    %0 = vector.load %arg1[%c0, %c0_0] : memref<32x32xf32, #tpu.memory_space<vmem>>, vector<32x32xf32>
    %c0_1 = arith.constant 0 : index
    %c0_2 = arith.constant 0 : index
    %1 = vector.load %arg2[%c0_1, %c0_2] : memref<32x48xf32, #tpu.memory_space<vmem>>, vector<32x48xf32>
    %cst = arith.constant dense<0.000000e+00> : vector<32x48xf32>
    %2 = tpu.matmul %0, %1, %cst {dimension_numbers = #tpu.dot_dimension_numbers<[1], [0], [0], [1], [0, 0, 1, 1], [], []>} : vector<32x32xf32>, vector<32x48xf32>, vector<32x48xf32> -> vector<32x48xf32>
    %c0_3 = arith.constant 0 : index
    %c0_4 = arith.constant 0 : index
    %3 = vector.load %arg3[%c0_3, %c0_4] : memref<1x48xf32, #tpu.memory_space<vmem>>, vector<1x48xf32>
    %4 = vector.broadcast %3 : vector<1x48xf32> to vector<32x48xf32>
    %5 = arith.addf %2, %4 : vector<32x48xf32>
    %c0_5 = arith.constant 0 : index
    %c0_6 = arith.constant 0 : index
    %6 = vector.load %arg4[%c0_5, %c0_6] : memref<32x48xf32, #tpu.memory_space<vmem>>, vector<32x48xf32>
    tpu.vector_store %arg4[%c0_5, %c0_6], %5 {strides = array<i32>} : memref<32x48xf32, #tpu.memory_space<vmem>>, vector<32x48xf32>,
    return
  }
  func.func @transform_0(%arg0: i32) -> (i32, i32) {
    %c0_i32 = arith.constant 0 : i32
    %c0_i32_0 = arith.constant 0 : i32
    return %arg0, %c0_i32 : i32, i32
  }
  func.func @transform_1(%arg0: i32) -> (i32, i32) {
    %c0_i32 = arith.constant 0 : i32
    %c0_i32_0 = arith.constant 0 : i32
    %c0_i32_1 = arith.constant 0 : i32
    return %c0_i32, %c0_i32_0 : i32, i32
  }
  func.func @transform_2(%arg0: i32) -> (i32, i32) {
    %c0_i32 = arith.constant 0 : i32
    %c0_i32_0 = arith.constant 0 : i32
    %c0_i32_1 = arith.constant 0 : i32
    return %c0_i32, %c0_i32_0 : i32, i32
  }
  func.func @transform_3(%arg0: i32) -> (i32, i32) {
    %c0_i32 = arith.constant 0 : i32
    %c0_i32_0 = arith.constant 0 : i32
    return %arg0, %c0_i32 : i32, i32
  }
}

</mosaic_0001>

<llo_original>
// kernel: tpu_custom_call.1
$region0: #{tpu_custom_call.1}
  #allocation0 [shape = 'u32[]', space=smem, size = 0x4, offset = 0x4, fixed_abs, tag = 'smem constant byte address 0x4 - core index']
  #allocation1 [shape = 'u32[144,128]{1,0:T(1,128)}', space=vmem, size = 0x12000, scoped, tag = 'internal scratch']
  %s0 = inlined_call_operand.hbm [shape: f32[32,32], index: 0, kind: input, shape index: {}]
  %s1 = inlined_call_operand.hbm [shape: f32[32,48], index: 1, kind: input, shape index: {}]
  %s2 = inlined_call_operand.vmem [shape: f32[1,48], index: 2, kind: input, shape index: {}]
  %s3 = inlined_call_operand.hbm [shape: f32[32,48], index: 3, kind: output, shape index: {}]
  %s4 = sld [smem:[#allocation0]]
  $region30: #{tpu_custom_call.1} parent=0
    _
  %s6 = ssub.s32 1, %s4
  %s7 = scalar_select 0, %s6, %s4
  $region1: #{tpu_custom_call.1} parent=0
    #allocation2 [shape = 'u8[16384]{0}', space=vmem, size = 0x4000, scoped, tag = 'input window, operand 0, single buffered']
    #allocation3 [shape = 's32[1]{0}', space=sflag, size = 0x4, scoped, tag = 'scoped memory for tpu_custom_call.1']
    #allocation4 [shape = 's32[1]{0}', space=sflag, size = 0x4, scoped, tag = 'scoped memory for tpu_custom_call.1']
    #allocation5 [shape = 'u8[16384]{0}', space=vmem, size = 0x4000, scoped, tag = 'input window, operand 1, single buffered']
    #allocation6 [shape = 's32[1]{0}', space=sflag, size = 0x4, scoped, tag = 'scoped memory for tpu_custom_call.1']
    #allocation7 [shape = 'u8[16384]{0}', space=vmem, size = 0x4000, scoped, tag = 'output window, operand 0, single buffered']
    %8 = vsyncpa [#allocation3], 0
    %9 = vsyncpa [#allocation6], 0
    %10 = vsyncpa [#allocation4], 0
    // Predicated region
    $region2: #{tpu_custom_call.1} parent=1 // pred_check
      _
    $region3: #{tpu_custom_call.1} parent=1 // pred_check_branch
      %12 = sbr.rel (0) target = $region5
    $region4: #{tpu_custom_call.1} parent=1 // pred_region
      %s14 = ssub.s32 512, 512
      %15 = vsyncadd [#allocation3], %s14
      %s16 = sshll.u32 [#allocation2], 4
      %s17 = int_to_ptr.vmem [resolvable:$true] %s16
      %22 = dma.hbm_to_vmem [thread:$0]  %s0, 512, %s17, [#allocation3], 128, 128, 8
    $region5: #{tpu_custom_call.1} parent=1 // pred_fallthru
      _
    // Predicated region
    $region6: #{tpu_custom_call.1} parent=1 // pred_check
      _
    $region7: #{tpu_custom_call.1} parent=1 // pred_check_branch
      %24 = sbr.rel (0) target = $region9
    $region8: #{tpu_custom_call.1} parent=1 // pred_region
      %s26 = ssub.s32 512, 512
      %27 = vsyncadd [#allocation6], %s26
      %s28 = sshll.u32 [#allocation5], 4
      %s29 = int_to_ptr.vmem [resolvable:$true] %s28
      %34 = dma.hbm_to_vmem [thread:$0]  %s1, 512, %s29, [#allocation6], 128, 128, 8
    $region9: #{tpu_custom_call.1} parent=1 // pred_fallthru
      _
    // Predicated region
    $region10: #{tpu_custom_call.1} parent=1 // pred_check
      _
    $region11: #{tpu_custom_call.1} parent=1 // pred_check_branch
      %36 = sbr.rel (0) target = $region13
    $region12: #{tpu_custom_call.1} parent=1 // pred_region
      _
    $region13: #{tpu_custom_call.1} parent=1 // pred_fallthru
      _
    // Predicated region
    $region14: #{tpu_custom_call.1} parent=1 // pred_check
      _
    $region15: #{tpu_custom_call.1} parent=1 // pred_check_branch
      %38 = sbr.rel (0) target = $region17
    $region16: #{tpu_custom_call.1} parent=1 // pred_region
      %39 = dma.done [#allocation3], 512
    $region17: #{tpu_custom_call.1} parent=1 // pred_fallthru
      _
    // Predicated region
    $region18: #{tpu_custom_call.1} parent=1 // pred_check
      _
    $region19: #{tpu_custom_call.1} parent=1 // pred_check_branch
      %41 = sbr.rel (0) target = $region21
    $region20: #{tpu_custom_call.1} parent=1 // pred_region
      %42 = dma.done [#allocation6], 512
    $region21: #{tpu_custom_call.1} parent=1 // pred_fallthru
      _
    %v43 = vld [vmem:[#allocation2] sm:$0xff]
    %v44 = vld [vmem:[#allocation2 + $0x8] sm:$0xff]
    %v45 = vld [vmem:[#allocation2 + $0x10] sm:$0xff]
    %v46 = vld [vmem:[#allocation2 + $0x18] sm:$0xff]
    %v47 = vld [vmem:[#allocation5] sm:$0xff]
    %v48 = vld [vmem:[#allocation5 + $0x8] sm:$0xff]
    %v49 = vld [vmem:[#allocation5 + $0x10] sm:$0xff]
    %v50 = vld [vmem:[#allocation5 + $0x18] sm:$0xff]
    %v51 = vld [vmem:[%s2] sm:$0x1]
    %v53 = vlaneseq
    %v54 = vshrl.u32 %v53, 7
    %v55 = vsub.s32 0, %v54
    %v56 = vrot.slane %v51, %v55
    %vm58 = vcmask 261120
    %v60 = vsel %vm58, %v43, 0
    %v63 = vsel %vm58, %v44, 0
    %v66 = vsel %vm58, %v45, 0
    %v69 = vsel %vm58, %v46, 0
    %71 = vmatprep.subr.mxu0 0.0
    %72 = vmatpush1.msra.mxu0 %v47
    %73 = vmatprep.subr.mxu0 0.0
    %74 = vmatpush1.msra.mxu0 %v48
    %75 = vmatprep.subr.mxu0 0.0
    %76 = vmatpush1.msra.mxu0 %v49
    %77 = vmatprep.subr.mxu0 0.0
    %78 = vmatpush1.msra.mxu0 %v50
    %79 = vmatprep.subr.mxu0 0.0
    %80 = vmatpush1.msra.mxu0 0.0
    %81 = vmatprep.subr.mxu0 0.0
    %82 = vmatpush1.msra.mxu0 0.0
    %83 = vmatprep.subr.mxu0 0.0
    %84 = vmatpush1.msra.mxu0 0.0
    %85 = vmatprep.subr.mxu0 0.0
    %86 = vmatpush1.msra.mxu0 0.0
    %87 = vmatprep.subr.mxu0 0.0
    %88 = vmatpush1.msra.mxu0 0.0
    %89 = vmatprep.subr.mxu0 0.0
    %90 = vmatpush1.msra.mxu0 0.0
    %91 = vmatprep.subr.mxu0 0.0
    %92 = vmatpush1.msra.mxu0 0.0
    %93 = vmatprep.subr.mxu0 0.0
    %94 = vmatpush1.msra.mxu0 0.0
    %95 = vmatprep.subr.mxu0 0.0
    %96 = vmatpush1.msra.mxu0 0.0
    %97 = vmatprep.subr.mxu0 0.0
    %98 = vmatpush1.msra.mxu0 0.0
    %99 = vmatprep.subr.mxu0 0.0
    %100 = vmatpush1.msra.mxu0 0.0
    %101 = vmatprep.subr.mxu0 0.0
    %102 = vmatpush1.msra.mxu0 0.0
    %103 = vmatprep.subr.mxu0 0.0
    %104 = vmatpush1.msra.mxu0 0.0
    %105 = vmatprep.subr.mxu0 0.0
    %106 = vmatpush1.msra.mxu0 0.0
    %107 = vmatprep.subr.mxu0 0.0
    %108 = vmatpush1.msra.mxu0 0.0
    %109 = vmatprep.subr.mxu0 0.0
    %110 = vmatpush1.msra.mxu0 0.0
    %111 = vmatprep.subr.mxu0 0.0
    %112 = vmatpush1.msra.mxu0 0.0
    %113 = vmatprep.subr.mxu0 0.0
    %114 = vmatpush1.msra.mxu0 0.0
    %115 = vmatprep.subr.mxu0 0.0
    %116 = vmatpush1.msra.mxu0 0.0
    %117 = vmatprep.subr.mxu0 0.0
    %118 = vmatpush1.msra.mxu0 0.0
    %119 = vmatprep.subr.mxu0 0.0
    %120 = vmatpush1.msra.mxu0 0.0
    %121 = vmatprep.subr.mxu0 0.0
    %122 = vmatpush1.msra.mxu0 0.0
    %123 = vmatprep.subr.mxu0 0.0
    %124 = vmatpush1.msra.mxu0 0.0
    %125 = vmatprep.subr.mxu0 0.0
    %126 = vmatpush1.msra.mxu0 0.0
    %127 = vmatprep.subr.mxu0 0.0
    %128 = vmatpush1.msra.mxu0 0.0
    %129 = vmatprep.subr.mxu0 0.0
    %130 = vmatpush1.msra.mxu0 0.0
    %131 = vmatprep.subr.mxu0 0.0
    %132 = vmatpush1.msra.mxu0 0.0
    %133 = vmatprep.subr.mxu0 0.0
    %134 = vmatpush1.msra.mxu0 0.0
    %135 = vmatprep.mubr.f32.mxu0 0.0
    %136 = vmatmul.mubr.f32.gmra.mrb[0].mxu0 %v60
    %v137 = vpop.f32.mrb[0].mxu0
    %v138 = vadd.f32 %v56, %v137
    %v139 = vpop.f32.mrb[0].mxu0
    %140 = vmatprep.mubr.f32.mxu0 0.0
    %141 = vmatmul.mubr.f32.gmra.mrb[0].mxu0 %v63
    %v142 = vpop.f32.mrb[0].mxu0
    %v143 = vadd.f32 %v56, %v142
    %v144 = vpop.f32.mrb[0].mxu0
    %145 = vmatprep.mubr.f32.mxu0 0.0
    %146 = vmatmul.mubr.f32.gmra.mrb[0].mxu0 %v66
    %v147 = vpop.f32.mrb[0].mxu0
    %v148 = vadd.f32 %v56, %v147
    %v149 = vpop.f32.mrb[0].mxu0
    %150 = vmatprep.mubr.f32.mxu0 0.0
    %151 = vmatmul.mubr.f32.gmra.mrb[0].mxu0 %v69
    %v152 = vpop.f32.mrb[0].mxu0
    %v153 = vadd.f32 %v56, %v152
    %v154 = vpop.f32.mrb[0].mxu0
    %155 = vdwg.mxu0
    %vm156 = vcmask 392192
    %157 = vst.msk [vmem:[#allocation7] sm:$0xff] %vm156, %v138
    %158 = vst.msk [vmem:[#allocation7 + $0x8] sm:$0xff] %vm156, %v143
    %159 = vst.msk [vmem:[#allocation7 + $0x10] sm:$0xff] %vm156, %v148
    %160 = vst.msk [vmem:[#allocation7 + $0x18] sm:$0xff] %vm156, %v153
    // Predicated region
    $region22: #{tpu_custom_call.1} parent=1 // pred_check
      _
    $region23: #{tpu_custom_call.1} parent=1 // pred_check_branch
      %162 = sbr.rel (0) target = $region25
    $region24: #{tpu_custom_call.1} parent=1 // pred_region
      %s164 = ssub.s32 512, 512
      %165 = vsyncadd [#allocation4], %s164
      %s166 = sshll.u32 [#allocation7], 4
      %s167 = int_to_ptr.vmem [resolvable:$true] %s166
      %172 = dma.vmem_to_hbm [thread:$0]  %s167, 512, %s3, [#allocation4], 128, 128, 8
    $region25: #{tpu_custom_call.1} parent=1 // pred_fallthru
      _
    // Predicated region
    $region26: #{tpu_custom_call.1} parent=1 // pred_check
      _
    $region27: #{tpu_custom_call.1} parent=1 // pred_check_branch
      %174 = sbr.rel (0) target = $region29
    $region28: #{tpu_custom_call.1} parent=1 // pred_region
      %175 = dma.done [#allocation4], 512
    $region29: #{tpu_custom_call.1} parent=1 // pred_fallthru
      _
    %176 = vsyncpa [#allocation3], 1
    %177 = vsyncpa [#allocation6], 1
    %178 = vsyncpa [#allocation4], 1

</llo_original>
